<compile_context>
chip_gen: v7x
topology: tpu7x:2x2x1
jax: 0.10.0
libtpu: 0.0.40
codegen_flags: <defaults>
</compile_context>

<pallas_src>
import jax
import jax.numpy as jnp
import numpy as np
from jax.experimental import pallas as pl
from jax.experimental.pallas import tpu as pltpu


def _mixture_kernel(x_ref, weff_ref, bias_ref, out_ref):
    """out[b, :, tile] = W_eff[b] @ x[b, :, tile] + bias[b] (bias broadcast over lanes)."""
    # Single MXU push per tile; bias (C, 1) broadcasts across the lane dim.
    # For large C on v6e/v7x, operands could be cast to bf16 here (keeping the
    # f32 accumulation via preferred_element_type) for ~2x MXU throughput.
    out_ref[0] = (
        jnp.dot(weff_ref[0], x_ref[0], preferred_element_type=jnp.float32)
        + bias_ref[0]
    ).astype(out_ref.dtype)


def binary_diffusion_composition(x_nchw, t, params, *, m, y_1, y_2, guidance_scale):
    B, C, H, W = x_nchw.shape
    S = H * W
    k_idx = (y_1 - 1) * m + (y_2 - 1)

    x = x_nchw.reshape(B, C, S).astype(jnp.float32)
    Wc, bc, tc, Ws, bs = (params[k] for k in ("Wc", "bc", "tc", "Ws", "bs"))

    # ---- classifier / mixture-weight prologue (tiny, lane-sparse): plain JAX ----
    pooled = x.mean(axis=-1)                                       # (B, C)
    logits = pooled @ Wc + bc + t[:, None] * tc                    # (B, K)
    probs = jax.nn.softmax(logits, axis=-1)                        # (B, K) == exp(log_softmax)
    w = probs.reshape(B, m, m).sum(axis=-1)                        # (B, m)  sum_j exp(logp)[:, i, j]
    # Analytic d/dx log_softmax(logits)[k_idx] through the mean pool (replaces
    # torch .backward); constant over the spatial axis, so only (B, C) is needed.
    cls_grad_chan = (Wc[:, k_idx][None, :] - probs @ Wc.T) / float(S)   # (B, C)

    # ---- fold the m score models into one effective weight / bias per batch ----
    W_eff = jnp.einsum("bi,icd->bcd", w, Ws)                       # (B, C, C)
    b_eff = jnp.einsum("bi,ci->bc", w, bs)                         # (B, C)
    bias = b_eff * t[:, None] + guidance_scale * cls_grad_chan     # (B, C)
    bias = bias[:, :, None]                                        # (B, C, 1)

    # ---- spatial tiling: lane-dense blocks, sized well under VMEM budget ----
    max_lanes = 2048                       # 4 dbl-buffered C*tS*4B tiles stay tiny vs 32 MiB
    tS = S if S <= max_lanes else max_lanes     # tS == S or a multiple of 128
    n_s = pl.cdiv(S, tS)

    out = pl.pallas_call(
        _mixture_kernel,
        out_shape=jax.ShapeDtypeStruct((B, C, S), jnp.float32),
        grid=(B, n_s),
        in_specs=[
            pl.BlockSpec((1, C, tS), lambda b, s: (b, 0, s)),      # x tile
            pl.BlockSpec((1, C, C), lambda b, s: (b, 0, 0)),       # W_eff (re-used across s)
            pl.BlockSpec((1, C, 1), lambda b, s: (b, 0, 0)),       # combined bias
        ],
        out_specs=pl.BlockSpec((1, C, tS), lambda b, s: (b, 0, s)),
        compiler_params=pltpu.CompilerParams(
            dimension_semantics=("parallel", "parallel"),
            vmem_limit_bytes=32 * 1024 * 1024,
        ),
    )(x, W_eff, bias)
    return out.reshape(B, C, H, W)


def reference(x_nchw, t, params, *, m, y_1, y_2, guidance_scale):
    """Pure-JAX reference, with cls_grad via jax.grad (mirrors torch .backward)."""
    B, C, H, W = x_nchw.shape
    S = H * W
    x = x_nchw.reshape(B, C, S).astype(jnp.float32)
    Wc, bc, tc, Ws, bs = (params[k] for k in ("Wc", "bc", "tc", "Ws", "bs"))

    def classifier(xf):
        pooled = xf.mean(-1)                                   # (B, C)
        logits = pooled @ Wc + bc + t[:, None] * tc            # (B, K)
        return jax.nn.log_softmax(logits, axis=-1).reshape(xf.shape[0], m, m)

    def selected(xf):
        return classifier(xf)[:, y_1 - 1, y_2 - 1].sum()

    cls_grad = jax.grad(selected)(x)                           # (B, C, S)
    logp = classifier(x)
    w = jnp.exp(logp).sum(axis=2)                              # (B, m)
    scores = jnp.einsum("icd,bds->bics", Ws, x)                # (B, m, C, S)
    scores = scores + bs.T[None, :, :, None] * t[:, None, None, None]
    mixture = (scores * w[:, :, None, None]).sum(axis=1)       # (B, C, S)
    out = mixture + guidance_scale * cls_grad
    return out.reshape(B, C, H, W)


if __name__ == "__main__":
    B, C, H, W = 2, 4, 16, 16
    m, y_1, y_2, guidance_scale = 3, 1, 2, 1.5
    K = m * m

    key = jax.random.PRNGKey(0)
    ks = jax.random.split(key, 7)
    x = jax.random.normal(ks[0], (B, C, H, W), jnp.float32)
    t = jax.random.uniform(ks[1], (B,), jnp.float32)
    params = dict(
        Wc=0.1 * jax.random.normal(ks[2], (C, K), jnp.float32),
        bc=0.1 * jax.random.normal(ks[3], (1, K), jnp.float32),
        tc=0.1 * jax.random.normal(ks[4], (1, K), jnp.float32),
        Ws=0.2 * jax.random.normal(ks[5], (m, C, C), jnp.float32),
        bs=0.1 * jax.random.normal(ks[6], (C, m), jnp.float32),
    )

    out = binary_diffusion_composition(
        x, t, params, m=m, y_1=y_1, y_2=y_2, guidance_scale=guidance_scale)
    out = jax.block_until_ready(out)

    ref = reference(x, t, params, m=m, y_1=y_1, y_2=y_2,
                    guidance_scale=guidance_scale)
    np.testing.assert_allclose(np.asarray(out), np.asarray(ref),
                               rtol=2e-4, atol=2e-5)
    print("KERNEL_OK")
</pallas_src>

<mosaic_0001>
module attributes {stable_mosaic.version = 11 : i64} {
  func.func @_mixture_kernel(%arg0: i32, %arg1: i32, %arg2: memref<1x4x256xf32, #tpu.memory_space<vmem>>, %arg3: memref<1x4x4xf32, #tpu.memory_space<vmem>>, %arg4: memref<1x4x1xf32, #tpu.memory_space<vmem>>, %arg5: memref<1x4x256xf32, #tpu.memory_space<vmem>>) attributes {dimension_semantics = [#tpu.dimension_semantics<parallel>, #tpu.dimension_semantics<parallel>], iteration_bounds = array<i64: 2, 1>, scalar_prefetch = 0 : i64, scratch_operands = 0 : i64, tpu.core_type = #tpu.core_type<tc>, window_params = [{transform_indices = @transform_0, window_bounds = array<i64: 1, 4, 256>}, {transform_indices = @transform_1, window_bounds = array<i64: 1, 4, 4>}, {transform_indices = @transform_2, window_bounds = array<i64: 1, 4, 1>}, {transform_indices = @transform_3, window_bounds = array<i64: 1, 4, 256>}]} {
    %c0 = arith.constant 0 : index
    %c0_0 = arith.constant 0 : index
    %c0_1 = arith.constant 0 : index
    %0 = vector.load %arg3[%c0, %c0_0, %c0_1] : memref<1x4x4xf32, #tpu.memory_space<vmem>>, vector<1x4x4xf32>
    %1 = vector.shape_cast %0 : vector<1x4x4xf32> to vector<4x4xf32>
    %c0_2 = arith.constant 0 : index
    %c0_3 = arith.constant 0 : index
    %c0_4 = arith.constant 0 : index
    %2 = vector.load %arg2[%c0_2, %c0_3, %c0_4] : memref<1x4x256xf32, #tpu.memory_space<vmem>>, vector<1x4x256xf32>
    %3 = vector.shape_cast %2 : vector<1x4x256xf32> to vector<4x256xf32>
    %cst = arith.constant dense<0.000000e+00> : vector<4x256xf32>
    %4 = tpu.matmul %1, %3, %cst {dimension_numbers = #tpu.dot_dimension_numbers<[1], [0], [0], [1], [0, 0, 1, 1], [], []>} : vector<4x4xf32>, vector<4x256xf32>, vector<4x256xf32> -> vector<4x256xf32>
    %c0_5 = arith.constant 0 : index
    %c0_6 = arith.constant 0 : index
    %c0_7 = arith.constant 0 : index
    %5 = vector.load %arg4[%c0_5, %c0_6, %c0_7] : memref<1x4x1xf32, #tpu.memory_space<vmem>>, vector<1x4x1xf32>
    %6 = vector.shape_cast %5 : vector<1x4x1xf32> to vector<4x1xf32>
    %7 = vector.broadcast %6 : vector<4x1xf32> to vector<4x256xf32>
    %8 = arith.addf %4, %7 : vector<4x256xf32>
    %c0_8 = arith.constant 0 : index
    %c0_9 = arith.constant 0 : index
    %c0_10 = arith.constant 0 : index
    %9 = vector.load %arg5[%c0_8, %c0_9, %c0_10] : memref<1x4x256xf32, #tpu.memory_space<vmem>>, vector<1x4x256xf32>
    %10 = vector.shape_cast %9 : vector<1x4x256xf32> to vector<4x256xf32>
    %11 = vector.shape_cast %8 : vector<4x256xf32> to vector<1x4x256xf32>
    tpu.vector_store %arg5[%c0_8, %c0_9, %c0_10], %11 {strides = array<i32>} : memref<1x4x256xf32, #tpu.memory_space<vmem>>, vector<1x4x256xf32>,
    return
  }
  func.func @transform_0(%arg0: i32, %arg1: i32) -> (i32, i32, i32) {
    %c0_i32 = arith.constant 0 : i32
    %c0_i32_0 = arith.constant 0 : i32
    return %arg0, %c0_i32, %arg1 : i32, i32, i32
  }
  func.func @transform_1(%arg0: i32, %arg1: i32) -> (i32, i32, i32) {
    %c0_i32 = arith.constant 0 : i32
    %c0_i32_0 = arith.constant 0 : i32
    %c0_i32_1 = arith.constant 0 : i32
    return %arg0, %c0_i32, %c0_i32_0 : i32, i32, i32
  }
  func.func @transform_2(%arg0: i32, %arg1: i32) -> (i32, i32, i32) {
    %c0_i32 = arith.constant 0 : i32
    %c0_i32_0 = arith.constant 0 : i32
    %c0_i32_1 = arith.constant 0 : i32
    return %arg0, %c0_i32, %c0_i32_0 : i32, i32, i32
  }
  func.func @transform_3(%arg0: i32, %arg1: i32) -> (i32, i32, i32) {
    %c0_i32 = arith.constant 0 : i32
    %c0_i32_0 = arith.constant 0 : i32
    return %arg0, %c0_i32, %arg1 : i32, i32, i32
  }
}

</mosaic_0001>

<llo_original>
// kernel: tpu_custom_call.1
$region0: #{tpu_custom_call.1}
  #allocation0 [shape = 'u32[]', space=smem, size = 0x4, offset = 0x4, fixed_abs, tag = 'smem constant byte address 0x4 - core index']
  #allocation1 [shape = 'u32[144,128]{1,0:T(1,128)}', space=vmem, size = 0x12000, scoped, tag = 'internal scratch']
  %s0 = inlined_call_operand.hbm [shape: f32[2,4,256], index: 0, kind: input, shape index: {}]
  %s1 = inlined_call_operand.vmem [shape: f32[2,4,4], index: 1, kind: input, shape index: {}]
  %s2 = inlined_call_operand.vmem [shape: f32[2,4,1], index: 2, kind: input, shape index: {}]
  %s3 = inlined_call_operand.hbm [shape: f32[2,4,256], index: 3, kind: output, shape index: {}]
  %s4 = sld [smem:[#allocation0]]
  $region49: #{tpu_custom_call.1} parent=0
    _
  %s6 = ssub.s32 1, %s4
  %s7 = scalar_select 0, %s6, %s4
  $region1: #{tpu_custom_call.1} parent=0
    #allocation2 [shape = 'u8[8192]{0}', space=vmem, size = 0x2000, scoped, tag = 'input window, operand 0']
    #allocation3 [shape = 's32[2]{0}', space=sflag, size = 0x8, scoped, tag = 'scoped memory for tpu_custom_call.1']
    #allocation4 [shape = 's32[2]{0}', space=sflag, size = 0x8, scoped, tag = 'scoped memory for tpu_custom_call.1']
    #allocation5 [shape = 'u8[8192]{0}', space=vmem, size = 0x2000, scoped, tag = 'output window, operand 0']
    %8 = vsyncpa [#allocation3], 0
    %s9 = scalar_lea.sflag [#allocation3], 1
    %10 = vsyncpa %s9, 0
    %11 = vsyncpa [#allocation4], 0
    %s12 = scalar_lea.sflag [#allocation4], 1
    %13 = vsyncpa %s12, 0
    loop: start=0, step=1, limit=4
    $region2: #{tpu_custom_call.1} parent=1 // loop_pre_header
      _
    $region3: #{tpu_custom_call.1} parent=1 // loop_header
      %s15 = sphi 0, %s19
      %p16 = scmp.ge.s32.totalorder %s15, 4
      %s22 = sphi 0, %s34
      %s23 = sphi 0, %s30
      %s24 = sphi 0, %s22
      %s25 = sphi 0, %s23
      %s26 = sphi 0, %s24
      %s27 = sphi 0, %s25
      %s39 = sphi 0, %s41
      %s42 = sphi 0, %s39
      %s43 = sphi 0, %s42
      %s59 = sphi 0, %s43
      %s65 = sphi 0, %s67
      %s68 = sphi 0, %s65
      %s69 = sphi 0, %s68
      %s85 = sphi 0, %s69
      %s91 = sphi 0, %s93
      %s94 = sphi 0, %s91
      %s95 = sphi 0, %s94
      %s111 = sphi 0, %s95
      %s119 = sphi 0, %s121
      %s122 = sphi 0, %s119
      %s123 = sphi 0, %s122
      %s139 = sphi 0, %s123
    $region4: #{tpu_custom_call.1} parent=1 // loop_header_branch
      %18 = sbr.rel (%p16) target = $region8
    $region5: #{tpu_custom_call.1} parent=1 // loop_body
      %s20 = ssub.s32 %s15, 1
      %s21 = ssub.s32 %s15, 2
      %s28 = sadd.s32 1, %s23
      %p29 = scmp.ge.s32.totalorder %s28, 1
      %s30 = scalar_select %p29, 0, %s28
      %s31 = sadd.s32 1, %s22
      %s32 = scalar_select %p29, %s31, %s22
      %p33 = scmp.ge.s32.totalorder %s32, 2
      %s34 = scalar_select %p33, 0, %s32
      %s35 = ssub.s32 %s22, %s34
      %s36 = ssub.s32 %s23, %s30
      %s37 = sor.u32 %s35, %s36
      %p38 = scmp.eq.s32.totalorder %s37, 0
      %s40 = sadd.s32 %s39, 1
      %s41 = scalar_select %p38, %s39, %s40
      %p44 = pneg %p38
      %p45 = scmp.eq.s32.totalorder %s15, 1
      %p46 = por %p44, %p45
      %p47 = scmp.ne.s32.totalorder %s39, %s42
      %p48 = scmp.eq.s32.totalorder %s15, 0
      %p49 = por %p47, %p48
      %p50 = scmp.ne.s32.totalorder %s39, %s42
      %p51 = scmp.eq.s32.totalorder %s20, 1
      %p52 = por %p50, %p51
      %p53 = scmp.ne.s32.totalorder %s42, %s43
      %p54 = scmp.eq.s32.totalorder %s20, 0
      %p55 = por %p53, %p54
      %p56 = scmp.ne.s32.totalorder %s42, %s43
      %p57 = scmp.eq.s32.totalorder %s21, 1
      %p58 = por %p56, %p57
      %p60 = scmp.ne.s32.totalorder %s43, %s59
      %p61 = scmp.eq.s32.totalorder %s21, 0
      %p62 = por %p60, %p61
      %s63 = ssub.s32 %s22, %s34
      %p64 = scmp.eq.s32.totalorder %s63, 0
      %s66 = sadd.s32 %s65, 1
      %s67 = scalar_select %p64, %s65, %s66
      %p70 = pneg %p64
      %p71 = scmp.eq.s32.totalorder %s15, 1
      %p72 = por %p70, %p71
      %p73 = scmp.ne.s32.totalorder %s65, %s68
      %p74 = scmp.eq.s32.totalorder %s15, 0
      %p75 = por %p73, %p74
      %p76 = scmp.ne.s32.totalorder %s65, %s68
      %p77 = scmp.eq.s32.totalorder %s20, 1
      %p78 = por %p76, %p77
      %p79 = scmp.ne.s32.totalorder %s68, %s69
      %p80 = scmp.eq.s32.totalorder %s20, 0
      %p81 = por %p79, %p80
      %p82 = scmp.ne.s32.totalorder %s68, %s69
      %p83 = scmp.eq.s32.totalorder %s21, 1
      %p84 = por %p82, %p83
      %p86 = scmp.ne.s32.totalorder %s69, %s85
      %p87 = scmp.eq.s32.totalorder %s21, 0
      %p88 = por %p86, %p87
      %s89 = ssub.s32 %s22, %s34
      %p90 = scmp.eq.s32.totalorder %s89, 0
      %s92 = sadd.s32 %s91, 1
      %s93 = scalar_select %p90, %s91, %s92
      %p96 = pneg %p90
      %p97 = scmp.eq.s32.totalorder %s15, 1
      %p98 = por %p96, %p97
      %p99 = scmp.ne.s32.totalorder %s91, %s94
      %p100 = scmp.eq.s32.totalorder %s15, 0
      %p101 = por %p99, %p100
      %p102 = scmp.ne.s32.totalorder %s91, %s94
      %p103 = scmp.eq.s32.totalorder %s20, 1
      %p104 = por %p102, %p103
      %p105 = scmp.ne.s32.totalorder %s94, %s95
      %p106 = scmp.eq.s32.totalorder %s20, 0
      %p107 = por %p105, %p106
      %p108 = scmp.ne.s32.totalorder %s94, %s95
      %p109 = scmp.eq.s32.totalorder %s21, 1
      %p110 = por %p108, %p109
      %p112 = scmp.ne.s32.totalorder %s95, %s111
      %p113 = scmp.eq.s32.totalorder %s21, 0
      %p114 = por %p112, %p113
      %s115 = ssub.s32 %s22, %s34
      %s116 = ssub.s32 %s23, %s30
      %s117 = sor.u32 %s115, %s116
      %p118 = scmp.eq.s32.totalorder %s117, 0
      %s120 = sadd.s32 %s119, 1
      %s121 = scalar_select %p118, %s119, %s120
      %p124 = pneg %p118
      %p125 = scmp.eq.s32.totalorder %s15, 1
      %p126 = por %p124, %p125
      %p127 = scmp.ne.s32.totalorder %s119, %s122
      %p128 = scmp.eq.s32.totalorder %s15, 0
      %p129 = por %p127, %p128
      %p130 = scmp.ne.s32.totalorder %s119, %s122
      %p131 = scmp.eq.s32.totalorder %s20, 1
      %p132 = por %p130, %p131
      %p133 = scmp.ne.s32.totalorder %s122, %s123
      %p134 = scmp.eq.s32.totalorder %s20, 0
      %p135 = por %p133, %p134
      %p136 = scmp.ne.s32.totalorder %s122, %s123
      %p137 = scmp.eq.s32.totalorder %s21, 1
      %p138 = por %p136, %p137
      %p140 = scmp.ne.s32.totalorder %s123, %s139
      %p141 = scmp.eq.s32.totalorder %s21, 0
      %p142 = por %p140, %p141
      %p143 = scmp.le.s32.totalorder 1, %s15
      %p144 = scmp.lt.s32.totalorder %s15, 3
      %p145 = pnand %p143, %p144
      %p146 = pneg %p145
      // Predicated region
      $region9: #{tpu_custom_call.1} parent=5 // pred_check
        _
      $region10: #{tpu_custom_call.1} parent=5 // pred_check_branch
        %148 = sbr.rel (%p145) target = $region12
      $region11: #{tpu_custom_call.1} parent=5 // pred_region
        %s149 = ssub.s32 %s15, 1
      $region12: #{tpu_custom_call.1} parent=5 // pred_fallthru
        _
      %p150 = scmp.lt.s32.totalorder %s15, 2
      // Predicated region
      $region13: #{tpu_custom_call.1} parent=5 // pred_check
        %p151 = pneg %p150
      $region14: #{tpu_custom_call.1} parent=5 // pred_check_branch
        %153 = sbr.rel (%p151) target = $region16
      $region15: #{tpu_custom_call.1} parent=5 // pred_region
        // Predicated region
        $region17: #{tpu_custom_call.1} parent=15 // pred_check
          %p154 = pneg %p49
        $region18: #{tpu_custom_call.1} parent=15 // pred_check_branch
          %156 = sbr.rel (%p154) target = $region20
        $region19: #{tpu_custom_call.1} parent=15 // pred_region
          %s157 = sand.u32 %s39, 1
          %s158 = scalar_lea.sflag [#allocation3], %s157
          %s159 = sand.u32 %s39, 1
          %s160 = smul.addr %s159, 8
          %s161 = scalar_lea.vmem [#allocation2], %s160
          %s162 = smul.u32 2, %s23
          %s164 = ssub.s32 128, 128
          %165 = vsyncadd %s158, %s164
          %s166 = smul.addr %s22, 2
          %s167 = sadd.s32 %s162, %s166
          %s168 = smul.addr %s167, 64
          %s169 = scalar_lea.hbm %s0, %s168
          %s171 = sshll.u32 %s161, 4
          %s172 = int_to_ptr.vmem [resolvable:$true] %s171
          %174 = dma.hbm_to_vmem [thread:$0]  %s169, 128, %s172, %s158
        $region20: #{tpu_custom_call.1} parent=15 // pred_fallthru
          _
        // Predicated region
        $region21: #{tpu_custom_call.1} parent=15 // pred_check
          %p175 = pneg %p75
        $region22: #{tpu_custom_call.1} parent=15 // pred_check_branch
          %177 = sbr.rel (%p175) target = $region24
        $region23: #{tpu_custom_call.1} parent=15 // pred_region
          %p178 = scmp.lt.s32.totalorder %s22, 1
          %s179 = scalar_select %p178, %s22, 1
          %s180 = smul.addr %s179, 4
          %s181 = scalar_lea.vmem %s1, %s180
        $region24: #{tpu_custom_call.1} parent=15 // pred_fallthru
          _
        // Predicated region
        $region25: #{tpu_custom_call.1} parent=15 // pred_check
          %p182 = pneg %p101
        $region26: #{tpu_custom_call.1} parent=15 // pred_check_branch
          %184 = sbr.rel (%p182) target = $region28
        $region27: #{tpu_custom_call.1} parent=15 // pred_region
          %p185 = scmp.lt.s32.totalorder %s22, 1
          %s186 = scalar_select %p185, %s22, 1
          %s187 = smul.addr %s186, 4
          %s188 = scalar_lea.vmem %s2, %s187
        $region28: #{tpu_custom_call.1} parent=15 // pred_fallthru
          _
      $region16: #{tpu_custom_call.1} parent=5 // pred_fallthru
        _
      %p189 = scmp.le.s32.totalorder 1, %s15
      %p190 = scmp.lt.s32.totalorder %s15, 3
      %p191 = pnand %p189, %p190
      %p192 = pneg %p191
      // Predicated region
      $region29: #{tpu_custom_call.1} parent=5 // pred_check
        _
      $region30: #{tpu_custom_call.1} parent=5 // pred_check_branch
        %194 = sbr.rel (%p191) target = $region32
      $region31: #{tpu_custom_call.1} parent=5 // pred_region
        %s195 = ssub.s32 %s15, 1
        %s196 = sand.u32 %s42, 1
        %s197 = scalar_lea.sflag [#allocation3], %s196
        %s198 = sand.u32 %s42, 1
        %s199 = smul.addr %s198, 8
        %s200 = scalar_lea.vmem [#allocation2], %s199
        // Predicated region
        $region33: #{tpu_custom_call.1} parent=31 // pred_check
          %p201 = pneg %p55
        $region34: #{tpu_custom_call.1} parent=31 // pred_check_branch
          %203 = sbr.rel (%p201) target = $region36
        $region35: #{tpu_custom_call.1} parent=31 // pred_region
          %204 = dma.done %s197, 128
        $region36: #{tpu_custom_call.1} parent=31 // pred_fallthru
          _
        %s205 = sand.u32 %s42, 1
        %s206 = scalar_lea.sflag [#allocation3], %s205
        %s207 = sand.u32 %s42, 1
        %s208 = smul.addr %s207, 8
        %s209 = scalar_lea.vmem [#allocation2], %s208
        %p210 = pneg %p55
        %p211 = pneg %p52
        %p212 = scmp.lt.s32.totalorder %s24, 1
        %s213 = scalar_select %p212, %s24, 1
        %s214 = smul.addr %s213, 4
        %s215 = scalar_lea.vmem %s1, %s214
        %p216 = pneg %p81
        %p217 = pneg %p78
        %p218 = scmp.lt.s32.totalorder %s24, 1
        %s219 = scalar_select %p218, %s24, 1
        %s220 = smul.addr %s219, 4
        %s221 = scalar_lea.vmem %s2, %s220
        %p222 = pneg %p107
        %p223 = pneg %p104
        %p224 = pneg %p135
        %p225 = pneg %p132
        %s226 = sand.u32 %s122, 1
        %s227 = scalar_lea.sflag [#allocation4], %s226
        %s228 = sand.u32 %s122, 1
        %s229 = smul.addr %s228, 8
        %s230 = scalar_lea.vmem [#allocation5], %s229
        %s231 = smul.u32 2, %s25
        %p232 = scmp.lt.s32.totalorder %s24, 1
        %s233 = scalar_select %p232, %s24, 1
        %s234 = smul.addr %s233, 4
        %s235 = scalar_lea.vmem %s1, %s234
        %p236 = scmp.lt.s32.totalorder %s24, 1
        %s237 = scalar_select %p236, %s24, 1
        %s238 = smul.addr %s237, 4
        %s239 = scalar_lea.vmem %s2, %s238
        %s240 = smul.u32 2, %s25
        %v241 = vld [vmem:[%s235] sm:$0xf]
        %v242 = vld [vmem:[%s200] sm:$0xff]
        %v243 = vld [vmem:[%s239] sm:$0xf]
        %245 = vset.pattern.permute.xlu0 0
        %246 = vperm.xlu0 %245, %v243
        %v247 = vpop.permute.xlu0 %246
        %v250 = vcombine.high %v242, %v242
        %vm251 = vcmask 31744
        %v253 = vsel %vm251, %v241, 0
        %vm255 = vcmask 1043456
        %v256 = vsel %vm255, %v242, 0
        %v258 = vsel %vm255, %v250, 0
        %260 = vmatprep.subr.mxu0 %v258
        %261 = vmatpush1.msra.mxu0 %v256
        %262 = vmatprep.subr.mxu0 0.0
        %263 = vmatpush1.msra.mxu0 0.0
        %264 = vmatprep.subr.mxu0 0.0
        %265 = vmatpush1.msra.mxu0 0.0
        %266 = vmatprep.subr.mxu0 0.0
        %267 = vmatpush1.msra.mxu0 0.0
        %268 = vmatprep.subr.mxu0 0.0
        %269 = vmatpush1.msra.mxu0 0.0
        %270 = vmatprep.subr.mxu0 0.0
        %271 = vmatpush1.msra.mxu0 0.0
        %272 = vmatprep.subr.mxu0 0.0
        %273 = vmatpush1.msra.mxu0 0.0
        %274 = vmatprep.subr.mxu0 0.0
        %275 = vmatpush1.msra.mxu0 0.0
        %276 = vmatprep.subr.mxu0 0.0
        %277 = vmatpush1.msra.mxu0 0.0
        %278 = vmatprep.subr.mxu0 0.0
        %279 = vmatpush1.msra.mxu0 0.0
        %280 = vmatprep.subr.mxu0 0.0
        %281 = vmatpush1.msra.mxu0 0.0
        %282 = vmatprep.subr.mxu0 0.0
        %283 = vmatpush1.msra.mxu0 0.0
        %284 = vmatprep.subr.mxu0 0.0
        %285 = vmatpush1.msra.mxu0 0.0
        %286 = vmatprep.subr.mxu0 0.0
        %287 = vmatpush1.msra.mxu0 0.0
        %288 = vmatprep.subr.mxu0 0.0
        %289 = vmatpush1.msra.mxu0 0.0
        %290 = vmatprep.subr.mxu0 0.0
        %291 = vmatpush1.msra.mxu0 0.0
        %292 = vmatprep.subr.mxu0 0.0
        %293 = vmatpush1.msra.mxu0 0.0
        %294 = vmatprep.subr.mxu0 0.0
        %295 = vmatpush1.msra.mxu0 0.0
        %296 = vmatprep.subr.mxu0 0.0
        %297 = vmatpush1.msra.mxu0 0.0
        %298 = vmatprep.subr.mxu0 0.0
        %299 = vmatpush1.msra.mxu0 0.0
        %300 = vmatprep.subr.mxu0 0.0
        %301 = vmatpush1.msra.mxu0 0.0
        %302 = vmatprep.subr.mxu0 0.0
        %303 = vmatpush1.msra.mxu0 0.0
        %304 = vmatprep.subr.mxu0 0.0
        %305 = vmatpush1.msra.mxu0 0.0
        %306 = vmatprep.subr.mxu0 0.0
        %307 = vmatpush1.msra.mxu0 0.0
        %308 = vmatprep.subr.mxu0 0.0
        %309 = vmatpush1.msra.mxu0 0.0
        %310 = vmatprep.subr.mxu0 0.0
        %311 = vmatpush1.msra.mxu0 0.0
        %312 = vmatprep.subr.mxu0 0.0
        %313 = vmatpush1.msra.mxu0 0.0
        %314 = vmatprep.subr.mxu0 0.0
        %315 = vmatpush1.msra.mxu0 0.0
        %316 = vmatprep.subr.mxu0 0.0
        %317 = vmatpush1.msra.mxu0 0.0
        %318 = vmatprep.subr.mxu0 0.0
        %319 = vmatpush1.msra.mxu0 0.0
        %320 = vmatprep.subr.mxu0 0.0
        %321 = vmatpush1.msra.mxu0 0.0
        %322 = vmatprep.subr.mxu0 0.0
        %323 = vmatpush1.msra.mxu0 0.0
        %324 = vmatprep.mubr.f32.mxu0 0.0
        %325 = vmatmul.mubr.f32.gmra.mrb[0].mxu0 %v253
        %v326 = vpop.f32.mrb[0].mxu0
        %v327 = vadd.f32 %v247, %v326
        %v328 = vpop.f32.mrb[0].mxu0
        %v329 = vadd.f32 %v247, %v328
        %330 = vdwg.mxu0
        %v333 = vcombine.low %v327, %v329
        %335 = vst [vmem:[%s230] sm:$0xff] %v333
        %s336 = sand.u32 %s122, 1
        %s337 = scalar_lea.sflag [#allocation4], %s336
        %s338 = sand.u32 %s122, 1
        %s339 = smul.addr %s338, 8
        %s340 = scalar_lea.vmem [#allocation5], %s339
        // Predicated region
        $region37: #{tpu_custom_call.1} parent=31 // pred_check
          %p341 = pneg %p132
        $region38: #{tpu_custom_call.1} parent=31 // pred_check_branch
          %343 = sbr.rel (%p341) target = $region40
        $region39: #{tpu_custom_call.1} parent=31 // pred_region
          %s344 = smul.u32 2, %s25
          %s346 = ssub.s32 128, 128
          %347 = vsyncadd %s337, %s346
          %s348 = smul.addr %s24, 2
          %s349 = sadd.s32 %s344, %s348
          %s350 = smul.addr %s349, 64
          %s351 = scalar_lea.hbm %s3, %s350
          %s353 = sshll.u32 %s340, 4
          %s354 = int_to_ptr.vmem [resolvable:$true] %s353
          %356 = dma.vmem_to_hbm [thread:$0]  %s354, 128, %s351, %s337
        $region40: #{tpu_custom_call.1} parent=31 // pred_fallthru
          _
      $region32: #{tpu_custom_call.1} parent=5 // pred_fallthru
        _
      %p357 = scmp.le.s32.totalorder 2, %s15
      // Predicated region
      $region41: #{tpu_custom_call.1} parent=5 // pred_check
        %p358 = pneg %p357
      $region42: #{tpu_custom_call.1} parent=5 // pred_check_branch
        %360 = sbr.rel (%p358) target = $region44
      $region43: #{tpu_custom_call.1} parent=5 // pred_region
        %s361 = ssub.s32 %s15, 2
        // Predicated region
        $region45: #{tpu_custom_call.1} parent=43 // pred_check
          %p362 = pneg %p138
        $region46: #{tpu_custom_call.1} parent=43 // pred_check_branch
          %364 = sbr.rel (%p362) target = $region48
        $region47: #{tpu_custom_call.1} parent=43 // pred_region
          %s365 = sand.u32 %s123, 1
          %s366 = scalar_lea.sflag [#allocation4], %s365
          %s367 = sand.u32 %s123, 1
          %s368 = smul.addr %s367, 8
          %s369 = scalar_lea.vmem [#allocation5], %s368
          %370 = dma.done %s366, 128
        $region48: #{tpu_custom_call.1} parent=43 // pred_fallthru
          _
      $region44: #{tpu_custom_call.1} parent=5 // pred_fallthru
        _
    $region6: #{tpu_custom_call.1} parent=1 // loop_footer
      %s19 = sadd.s32 1, %s15
    $region7: #{tpu_custom_call.1} parent=1 // loop_footer_branch
      %14 = sbr.rel target = $region3
    $region8: #{tpu_custom_call.1} parent=1 // loop_exit
      _
    %371 = vsyncpa [#allocation3], 1
    %s372 = scalar_lea.sflag [#allocation3], 1
    %373 = vsyncpa %s372, 1
    %374 = vsyncpa [#allocation4], 1
    %s375 = scalar_lea.sflag [#allocation4], 1
    %376 = vsyncpa %s375, 1

</llo_original>
